<compile_context>
chip_gen: v6e
topology: v6e:2x2x1
jax: 0.10.0
libtpu: 0.0.40
codegen_flags: <defaults>
</compile_context>

<pallas_src>
import functools

import jax
import jax.numpy as jnp
from jax.experimental import pallas as pl
from jax.experimental.pallas import tpu as pltpu


# Problems below this many FLOPs skip Pallas entirely: pad + pallas_call +
# slice fixed overhead dominates there and XLA's fused dot is strictly faster.
_TINY_FLOPS = 1 << 18


def _round_up(x, m):
    return (x + m - 1) // m * m


def _pick_tile(dim, cap, align):
    """Largest multiple of `align` that divides `dim` and is <= `cap`.

    `dim` must already be a multiple of `align`, so the search always
    terminates (bounded by cap/align iterations, done at trace/init time).
    """
    t = min(cap, dim)
    t -= t % align
    while t > align and dim % t:
        t -= align
    return max(t, align)


def _device_tile_caps():
    """Per-generation tile caps and scoped-VMEM limit.

    v5e/v6e: 128 MiB physical VMEM and <=~1.4 TB/s HBM -> big tiles (fewer
      accumulator read-modify-write passes, less x/w re-streaming) and a
      ~100 MiB scoped limit (worst-case double-buffered footprint ~40 MiB).
    v7x (and unknown chips): only 64 MiB VMEM per TensorCore, and 3.2 TB/s
      HBM makes this compute-bound anyway -> stay conservative (~16 MiB
      footprint, 48 MiB limit).
    """
    try:
        kind = jax.devices()[0].device_kind.lower()
    except Exception:  # no TPU visible: fall back to the safe config
        kind = ""
    if ("v5" in kind) or ("v6" in kind):
        return 1024, 1024, 2048, 100 << 20  # tm_cap, tn_cap, tk_cap, vmem_limit
    return 512, 1024, 1024, 48 << 20


def _matmul_kernel(x_ref, w_ref, o_ref, *, precision):
    # Grid: (i over M tiles, j over N tiles, k over K tiles); k is the
    # reduction axis (innermost, "arbitrary").  The output block's index_map
    # ignores k, so o_ref stays resident in VMEM across the whole reduction
    # and doubles as the f32 accumulator -- no scratch, no extra cast pass.
    # NOTE: accumulating into o_ref is only valid while k stays "arbitrary"
    # and the output index_map ignores k.
    @pl.when(pl.program_id(2) == 0)
    def _():
        o_ref[...] = jnp.zeros_like(o_ref)

    o_ref[...] += jnp.dot(
        x_ref[...],
        w_ref[...],
        preferred_element_type=jnp.float32,
        precision=precision,
    )


@functools.partial(
    jax.jit,
    static_argnames=("n_out", "tn", "tk", "tm_cap", "vmem_limit", "precision"),
)
def _linear_prepadded(x, w_p, *, n_out, tn, tk, tm_cap, vmem_limit, precision):
    """x @ w where w_p is already padded to (Kp, Np), multiples of (tk, tn)."""
    M, K = x.shape
    Kp, Np = w_p.shape
    assert Kp % tk == 0 and Np % tn == 0 and K <= Kp

    Mp = _round_up(M, 8)
    tm = _pick_tile(Mp, tm_cap, 8)

    # Guarantee >= 2 parallel output tiles so both TensorCores get work on
    # v7x (2 TC/chip, sharded across the "parallel" grid axes).
    if (Mp // tm) * (Np // tn) == 1:
        if tn % 256 == 0:
            tn //= 2
        elif tm % 16 == 0:
            tm //= 2

    # Only x is (possibly) padded per call; w was padded ONCE at init time.
    x_p = x
    if (Mp, Kp) != (M, K):
        x_p = jnp.pad(x, ((0, Mp - M), (0, Kp - K)))
    if x_p.dtype != w_p.dtype:  # bf16-MXU path: match the weight dtype
        x_p = x_p.astype(w_p.dtype)

    prec = {
        "highest": jax.lax.Precision.HIGHEST,   # exact-f32 parity with torch
        "default": jax.lax.Precision.DEFAULT,   # native bf16 MXU passes
    }[precision]

    grid = (Mp // tm, Np // tn, Kp // tk)
    # Truthful HBM traffic: x is re-streamed once per N tile, w once per M
    # tile, plus one pass over the f32 output.
    bytes_accessed = (
        x_p.size * x_p.dtype.itemsize * grid[1]
        + w_p.size * w_p.dtype.itemsize * grid[0]
        + Mp * Np * 4
    )

    out_p = pl.pallas_call(
        functools.partial(_matmul_kernel, precision=prec),
        out_shape=jax.ShapeDtypeStruct((Mp, Np), jnp.float32),
        grid_spec=pltpu.PrefetchScalarGridSpec(
            num_scalar_prefetch=0,
            grid=grid,
            in_specs=[
                pl.BlockSpec((tm, tk), lambda i, j, k: (i, k)),
                pl.BlockSpec((tk, tn), lambda i, j, k: (k, j)),
            ],
            out_specs=pl.BlockSpec((tm, tn), lambda i, j, k: (i, j)),
        ),
        compiler_params=pltpu.CompilerParams(
            dimension_semantics=("parallel", "parallel", "arbitrary"),
            vmem_limit_bytes=vmem_limit,
        ),
        cost_estimate=pl.CostEstimate(
            flops=2 * Mp * Np * Kp,
            bytes_accessed=bytes_accessed,
            transcendentals=0,
        ),
    )(x_p, w_p)

    # Slice only the axes that were actually padded: the common aligned case
    # returns the kernel output directly (no extra HBM copy of the output).
    if Mp == M and Np == n_out:
        return out_p
    if Np == n_out:
        return out_p[:M]
    return out_p[:M, :n_out]


class LinearPallas:
    """JAX/Pallas equivalent of the PyTorch `Linear` module (out = x @ w)."""

    def __init__(self, in_features, out_features, key, *, exact_f32=True):
        # torch.randn(in_features, out_features) -> standard normal init.
        self.w = jax.random.normal(key, (in_features, out_features), jnp.float32)
        self.in_features = in_features
        self.out_features = out_features
        self.exact_f32 = exact_f32

        tm_cap, tn_cap, tk_cap, vmem_limit = _device_tile_caps()
        self._tm_cap = tm_cap
        self._vmem_limit = vmem_limit

        # Tile sizes along K/N depend only on the (static) weight shape, so
        # fix them here and pad the weight exactly ONCE.  (Padding per forward
        # call would re-read/re-write the whole weight in HBM every step.)
        Kp = _round_up(in_features, 128)
        Np = _round_up(out_features, 128)
        self._tk = _pick_tile(Kp, tk_cap, 128)
        self._tn = _pick_tile(Np, tn_cap, 128)

        w_p = self.w
        if (Kp, Np) != (in_features, out_features):
            w_p = jnp.pad(self.w, ((0, Kp - in_features), (0, Np - out_features)))
        if not exact_f32:
            # bf16-MXU path: native bf16 matmul (f32 accumulation) is 3-6x
            # cheaper than emulated-f32 and halves weight HBM bytes.
            w_p = w_p.astype(jnp.bfloat16)
        self.w_padded = w_p

    def __call__(self, x):
        M = x.shape[0]
        if 2 * M * self.in_features * self.out_features < _TINY_FLOPS:
            # Too small for the kernel's fixed overhead -> plain XLA dot.
            prec = jax.lax.Precision.HIGHEST if self.exact_f32 else None
            return jnp.dot(x, self.w, precision=prec)
        return _linear_prepadded(
            x,
            self.w_padded,
            n_out=self.out_features,
            tn=self._tn,
            tk=self._tk,
            tm_cap=self._tm_cap,
            vmem_limit=self._vmem_limit,
            precision="highest" if self.exact_f32 else "default",
        )


if __name__ == "__main__":
    key = jax.random.PRNGKey(0)
    k1, k2, k3, k4 = jax.random.split(key, 4)
    HI = jax.lax.Precision.HIGHEST

    # Case 1: aligned shapes -> Pallas kernel, no padding, no output slice;
    # the single output tile is split so both v7x TensorCores get work.
    lin1 = LinearPallas(128, 256, k1)
    x1 = jax.random.normal(k2, (16, 128), jnp.float32)
    out1 = jax.block_until_ready(lin1(x1))
    ref1 = jnp.dot(x1, lin1.w, precision=HI)
    assert out1.shape == (16, 256)
    assert jnp.allclose(out1, ref1, atol=1e-4, rtol=1e-4), "case1 mismatch"

    # Case 2: ragged M/K/N -> exercises x padding + sliced output path.
    lin2 = LinearPallas(96, 200, k3)
    x2 = jax.random.normal(k4, (10, 96), jnp.float32)
    out2 = jax.block_until_ready(lin2(x2))
    ref2 = jnp.dot(x2, lin2.w, precision=HI)
    assert out2.shape == (10, 200)
    assert jnp.allclose(out2, ref2, atol=1e-4, rtol=1e-4), "case2 mismatch"

    # Case 3: tiny shape takes the fused-XLA-dot fast path (no Pallas).
    lin3 = LinearPallas(8, 16, k1)
    x3 = jax.random.normal(k2, (4, 8), jnp.float32)
    out3 = jax.block_until_ready(lin3(x3))
    assert jnp.allclose(out3, jnp.dot(x3, lin3.w, precision=HI),
                        atol=1e-4, rtol=1e-4), "case3 mismatch"

    # Case 4: opt-in bf16-MXU path (same weights as case 1), loose tolerance.
    lin4 = LinearPallas(128, 256, k1, exact_f32=False)
    out4 = jax.block_until_ready(lin4(x1))
    assert jnp.allclose(out4, ref1, atol=5e-1, rtol=5e-2), "case4 mismatch"

    print("KERNEL_OK")
</pallas_src>

<mosaic_0001>
module attributes {stable_mosaic.version = 11 : i64} {
  func.func @_matmul_kernel(%arg0: i32, %arg1: i32, %arg2: i32, %arg3: memref<16x128xf32, #tpu.memory_space<vmem>>, %arg4: memref<128x128xf32, #tpu.memory_space<vmem>>, %arg5: memref<16x128xf32, #tpu.memory_space<vmem>>) attributes {dimension_semantics = [#tpu.dimension_semantics<parallel>, #tpu.dimension_semantics<parallel>, #tpu.dimension_semantics<arbitrary>], iteration_bounds = array<i64: 1, 2, 1>, scalar_prefetch = 0 : i64, scratch_operands = 0 : i64, tpu.core_type = #tpu.core_type<tc>, window_params = [{transform_indices = @transform_0, window_bounds = array<i64: 16, 128>}, {transform_indices = @transform_1, window_bounds = array<i64: 128, 128>}, {transform_indices = @transform_2, window_bounds = array<i64: 16, 128>}]} {
    %c0_i32 = arith.constant 0 : i32
    %0 = arith.cmpi eq, %arg2, %c0_i32 : i32
    %1 = arith.extui %0 : i1 to i32
    %c0_i32_0 = arith.constant 0 : i32
    %2 = arith.cmpi ne, %1, %c0_i32_0 : i32
    scf.if %2 {
      %cst_8 = arith.constant 0.000000e+00 : f32
      %9 = vector.broadcast %cst_8 : f32 to vector<16x128xf32>
      %c0_9 = arith.constant 0 : index
      %c0_10 = arith.constant 0 : index
      %10 = vector.load %arg5[%c0_9, %c0_10] : memref<16x128xf32, #tpu.memory_space<vmem>>, vector<16x128xf32>
      tpu.vector_store %arg5[%c0_9, %c0_10], %9 {strides = array<i32>} : memref<16x128xf32, #tpu.memory_space<vmem>>, vector<16x128xf32>,
    } else {
    }
    %c0 = arith.constant 0 : index
    %c0_1 = arith.constant 0 : index
    %3 = vector.load %arg5[%c0, %c0_1] : memref<16x128xf32, #tpu.memory_space<vmem>>, vector<16x128xf32>
    %c0_2 = arith.constant 0 : index
    %c0_3 = arith.constant 0 : index
    %4 = vector.load %arg3[%c0_2, %c0_3] : memref<16x128xf32, #tpu.memory_space<vmem>>, vector<16x128xf32>
    %c0_4 = arith.constant 0 : index
    %c0_5 = arith.constant 0 : index
    %5 = vector.load %arg4[%c0_4, %c0_5] : memref<128x128xf32, #tpu.memory_space<vmem>>, vector<128x128xf32>
    %cst = arith.constant dense<0.000000e+00> : vector<16x128xf32>
    %6 = tpu.matmul %4, %5, %cst {dimension_numbers = #tpu.dot_dimension_numbers<[1], [0], [0], [1], [0, 0, 1, 1], [], []>, precision = #tpu.contract_precision<fp32>} : vector<16x128xf32>, vector<128x128xf32>, vector<16x128xf32> -> vector<16x128xf32>
    %7 = arith.addf %3, %6 : vector<16x128xf32>
    %c0_6 = arith.constant 0 : index
    %c0_7 = arith.constant 0 : index
    %8 = vector.load %arg5[%c0_6, %c0_7] : memref<16x128xf32, #tpu.memory_space<vmem>>, vector<16x128xf32>
    tpu.vector_store %arg5[%c0_6, %c0_7], %7 {strides = array<i32>} : memref<16x128xf32, #tpu.memory_space<vmem>>, vector<16x128xf32>,
    return
  }
  func.func @transform_0(%arg0: i32, %arg1: i32, %arg2: i32) -> (i32, i32) {
    %c0_i32 = arith.constant 0 : i32
    return %arg0, %arg2 : i32, i32
  }
  func.func @transform_1(%arg0: i32, %arg1: i32, %arg2: i32) -> (i32, i32) {
    %c0_i32 = arith.constant 0 : i32
    return %arg2, %arg1 : i32, i32
  }
  func.func @transform_2(%arg0: i32, %arg1: i32, %arg2: i32) -> (i32, i32) {
    %c0_i32 = arith.constant 0 : i32
    return %arg0, %arg1 : i32, i32
  }
}

</mosaic_0001>

<llo_original>
// kernel: _linear_prepadded.1
$region0: #{_linear_prepadded.1}
  #allocation0 [shape = 'u32[]', space=smem, size = 0x4, offset = 0x4, fixed_abs, tag = 'smem constant byte address 0x4 - core index']
  #allocation1 [shape = 'u32[144,128]{1,0:T(1,128)}', space=vmem, size = 0x12000, scoped, tag = 'internal scratch']
  %s0 = inlined_call_operand.hbm [shape: f32[16,128], index: 0, kind: input, shape index: {}]
  %s1 = inlined_call_operand.hbm [shape: f32[128,256], index: 1, kind: input, shape index: {}]
  %s2 = inlined_call_operand.hbm [shape: f32[16,256], index: 2, kind: output, shape index: {}]
  %s3 = sld [smem:[#allocation0]]
  $region53: #{_linear_prepadded.1} parent=0
    _
  %s5 = ssub.s32 1, %s3
  %s6 = scalar_select 0, %s5, %s3
  $region1: #{_linear_prepadded.1} parent=0
    #allocation2 [shape = 'u8[8192]{0}', space=vmem, size = 0x2000, scoped, tag = 'input window, operand 0, single buffered']
    #allocation3 [shape = 's32[2]{0}', space=sflag, size = 0x8, scoped, tag = 'scoped memory for _linear_prepadded.1']
    #allocation4 [shape = 's32[2]{0}', space=sflag, size = 0x8, scoped, tag = 'scoped memory for _linear_prepadded.1']
    #allocation5 [shape = 'u8[131072]{0}', space=vmem, size = 0x20000, scoped, tag = 'input window, operand 1']
    #allocation6 [shape = 's32[2]{0}', space=sflag, size = 0x8, scoped, tag = 'scoped memory for _linear_prepadded.1']
    #allocation7 [shape = 'u8[16384]{0}', space=vmem, size = 0x4000, scoped, tag = 'output window, operand 0']
    %7 = vsyncpa [#allocation3], 0
    %8 = vsyncpa [#allocation6], 0
    %s9 = scalar_lea.sflag [#allocation6], 1
    %10 = vsyncpa %s9, 0
    %11 = vsyncpa [#allocation4], 0
    %s12 = scalar_lea.sflag [#allocation4], 1
    %13 = vsyncpa %s12, 0
    loop: start=0, step=1, limit=4
    $region2: #{_linear_prepadded.1} parent=1 // loop_pre_header
      _
    $region3: #{_linear_prepadded.1} parent=1 // loop_header
      %s15 = sphi 0, %s19
      %p16 = scmp.ge.s32.totalorder %s15, 4
      %s22 = sphi 0, %s41
      %s23 = sphi 0, %s37
      %s24 = sphi 0, %s33
      %s25 = sphi 0, %s22
      %s26 = sphi 0, %s23
      %s27 = sphi 0, %s24
      %s28 = sphi 0, %s25
      %s29 = sphi 0, %s26
      %s30 = sphi 0, %s27
      %s46 = sphi 0, %s48
      %s49 = sphi 0, %s46
      %s50 = sphi 0, %s49
      %s66 = sphi 0, %s50
      %s74 = sphi 0, %s76
      %s77 = sphi 0, %s74
      %s78 = sphi 0, %s77
      %s94 = sphi 0, %s78
      %s102 = sphi 0, %s104
      %s105 = sphi 0, %s102
      %s106 = sphi 0, %s105
      %s122 = sphi 0, %s106
    $region4: #{_linear_prepadded.1} parent=1 // loop_header_branch
      %18 = sbr.rel (%p16) target = $region8
    $region5: #{_linear_prepadded.1} parent=1 // loop_body
      %s20 = ssub.s32 %s15, 1
      %s21 = ssub.s32 %s15, 2
      %s31 = sadd.s32 1, %s24
      %p32 = scmp.ge.s32.totalorder %s31, 1
      %s33 = scalar_select %p32, 0, %s31
      %s34 = sadd.s32 1, %s23
      %s35 = scalar_select %p32, %s34, %s23
      %p36 = scmp.ge.s32.totalorder %s35, 2
      %s37 = scalar_select %p36, 0, %s35
      %s38 = sadd.s32 1, %s22
      %s39 = scalar_select %p36, %s38, %s22
      %p40 = scmp.ge.s32.totalorder %s39, 1
      %s41 = scalar_select %p40, 0, %s39
      %s42 = ssub.s32 %s22, %s41
      %s43 = ssub.s32 %s24, %s33
      %s44 = sor.u32 %s42, %s43
      %p45 = scmp.eq.s32.totalorder %s44, 0
      %s47 = sadd.s32 %s46, 1
      %s48 = scalar_select %p45, %s46, %s47
      %p51 = pneg %p45
      %p52 = scmp.eq.s32.totalorder %s15, 1
      %p53 = por %p51, %p52
      %p54 = scmp.ne.s32.totalorder %s46, %s49
      %p55 = scmp.eq.s32.totalorder %s15, 0
      %p56 = por %p54, %p55
      %p57 = scmp.ne.s32.totalorder %s46, %s49
      %p58 = scmp.eq.s32.totalorder %s20, 1
      %p59 = por %p57, %p58
      %p60 = scmp.ne.s32.totalorder %s49, %s50
      %p61 = scmp.eq.s32.totalorder %s20, 0
      %p62 = por %p60, %p61
      %p63 = scmp.ne.s32.totalorder %s49, %s50
      %p64 = scmp.eq.s32.totalorder %s21, 1
      %p65 = por %p63, %p64
      %p67 = scmp.ne.s32.totalorder %s50, %s66
      %p68 = scmp.eq.s32.totalorder %s21, 0
      %p69 = por %p67, %p68
      %s70 = ssub.s32 %s24, %s33
      %s71 = ssub.s32 %s23, %s37
      %s72 = sor.u32 %s70, %s71
      %p73 = scmp.eq.s32.totalorder %s72, 0
      %s75 = sadd.s32 %s74, 1
      %s76 = scalar_select %p73, %s74, %s75
      %p79 = pneg %p73
      %p80 = scmp.eq.s32.totalorder %s15, 1
      %p81 = por %p79, %p80
      %p82 = scmp.ne.s32.totalorder %s74, %s77
      %p83 = scmp.eq.s32.totalorder %s15, 0
      %p84 = por %p82, %p83
      %p85 = scmp.ne.s32.totalorder %s74, %s77
      %p86 = scmp.eq.s32.totalorder %s20, 1
      %p87 = por %p85, %p86
      %p88 = scmp.ne.s32.totalorder %s77, %s78
      %p89 = scmp.eq.s32.totalorder %s20, 0
      %p90 = por %p88, %p89
      %p91 = scmp.ne.s32.totalorder %s77, %s78
      %p92 = scmp.eq.s32.totalorder %s21, 1
      %p93 = por %p91, %p92
      %p95 = scmp.ne.s32.totalorder %s78, %s94
      %p96 = scmp.eq.s32.totalorder %s21, 0
      %p97 = por %p95, %p96
      %s98 = ssub.s32 %s22, %s41
      %s99 = ssub.s32 %s23, %s37
      %s100 = sor.u32 %s98, %s99
      %p101 = scmp.eq.s32.totalorder %s100, 0
      %s103 = sadd.s32 %s102, 1
      %s104 = scalar_select %p101, %s102, %s103
      %p107 = pneg %p101
      %p108 = scmp.eq.s32.totalorder %s15, 1
      %p109 = por %p107, %p108
      %p110 = scmp.ne.s32.totalorder %s102, %s105
      %p111 = scmp.eq.s32.totalorder %s15, 0
      %p112 = por %p110, %p111
      %p113 = scmp.ne.s32.totalorder %s102, %s105
      %p114 = scmp.eq.s32.totalorder %s20, 1
      %p115 = por %p113, %p114
      %p116 = scmp.ne.s32.totalorder %s105, %s106
      %p117 = scmp.eq.s32.totalorder %s20, 0
      %p118 = por %p116, %p117
      %p119 = scmp.ne.s32.totalorder %s105, %s106
      %p120 = scmp.eq.s32.totalorder %s21, 1
      %p121 = por %p119, %p120
      %p123 = scmp.ne.s32.totalorder %s106, %s122
      %p124 = scmp.eq.s32.totalorder %s21, 0
      %p125 = por %p123, %p124
      %p126 = scmp.le.s32.totalorder 1, %s15
      %p127 = scmp.lt.s32.totalorder %s15, 3
      %p128 = pnand %p126, %p127
      %p129 = pneg %p128
      // Predicated region
      $region9: #{_linear_prepadded.1} parent=5 // pred_check
        _
      $region10: #{_linear_prepadded.1} parent=5 // pred_check_branch
        %131 = sbr.rel (%p128) target = $region12
      $region11: #{_linear_prepadded.1} parent=5 // pred_region
        %s132 = ssub.s32 %s15, 1
        // Predicated region
        $region13: #{_linear_prepadded.1} parent=11 // pred_check
          %p133 = pneg %p62
        $region14: #{_linear_prepadded.1} parent=11 // pred_check_branch
          %135 = sbr.rel (%p133) target = $region16
        $region15: #{_linear_prepadded.1} parent=11 // pred_region
          %s136 = smul.u32 2, %s25
          %s138 = ssub.s32 256, 256
          %139 = vsyncadd [#allocation3], %s138
          %s140 = sadd.s32 %s27, %s136
          %s141 = smul.addr %s140, 128
          %s142 = scalar_lea.hbm %s0, %s141
          %s143 = sshll.u32 [#allocation2], 4
          %s144 = int_to_ptr.vmem [resolvable:$true] %s143
          %149 = dma.hbm_to_vmem [thread:$0]  %s142, 256, %s144, [#allocation3], 128, 128, 8
        $region16: #{_linear_prepadded.1} parent=11 // pred_fallthru
          _
      $region12: #{_linear_prepadded.1} parent=5 // pred_fallthru
        _
      %p150 = scmp.lt.s32.totalorder %s15, 2
      // Predicated region
      $region17: #{_linear_prepadded.1} parent=5 // pred_check
        %p151 = pneg %p150
      $region18: #{_linear_prepadded.1} parent=5 // pred_check_branch
        %153 = sbr.rel (%p151) target = $region20
      $region19: #{_linear_prepadded.1} parent=5 // pred_region
        // Predicated region
        $region21: #{_linear_prepadded.1} parent=19 // pred_check
          %p154 = pneg %p84
        $region22: #{_linear_prepadded.1} parent=19 // pred_check_branch
          %156 = sbr.rel (%p154) target = $region24
        $region23: #{_linear_prepadded.1} parent=19 // pred_region
          %s157 = sand.u32 %s74, 1
          %s158 = scalar_lea.sflag [#allocation6], %s157
          %s159 = sand.u32 %s74, 1
          %s160 = smul.addr %s159, 128
          %s161 = scalar_lea.vmem [#allocation5], %s160
          %s162 = smul.u32 16, %s24
          %s164 = ssub.s32 2048, 2048
          %165 = vsyncadd %s158, %s164
          %s166 = smul.addr %s162, 2
          %s167 = sadd.s32 %s23, %s166
          %s168 = smul.addr %s167, 128
          %s169 = scalar_lea.hbm %s1, %s168
          %s170 = sshll.u32 %s161, 4
          %s171 = int_to_ptr.vmem [resolvable:$true] %s170
          %176 = dma.hbm_to_vmem [thread:$0]  %s169, 2048, %s171, %s158, 256, 128, 8
        $region24: #{_linear_prepadded.1} parent=19 // pred_fallthru
          _
      $region20: #{_linear_prepadded.1} parent=5 // pred_fallthru
        _
      %p177 = scmp.le.s32.totalorder 1, %s15
      %p178 = scmp.lt.s32.totalorder %s15, 3
      %p179 = pnand %p177, %p178
      %p180 = pneg %p179
      // Predicated region
      $region25: #{_linear_prepadded.1} parent=5 // pred_check
        _
      $region26: #{_linear_prepadded.1} parent=5 // pred_check_branch
        %182 = sbr.rel (%p179) target = $region28
      $region27: #{_linear_prepadded.1} parent=5 // pred_region
        %s183 = ssub.s32 %s15, 1
        // Predicated region
        $region29: #{_linear_prepadded.1} parent=27 // pred_check
          %p184 = pneg %p62
        $region30: #{_linear_prepadded.1} parent=27 // pred_check_branch
          %186 = sbr.rel (%p184) target = $region32
        $region31: #{_linear_prepadded.1} parent=27 // pred_region
          %187 = dma.done [#allocation3], 256
        $region32: #{_linear_prepadded.1} parent=27 // pred_fallthru
          _
        %s188 = sand.u32 %s77, 1
        %s189 = scalar_lea.sflag [#allocation6], %s188
        %s190 = sand.u32 %s77, 1
        %s191 = smul.addr %s190, 128
        %s192 = scalar_lea.vmem [#allocation5], %s191
        // Predicated region
        $region33: #{_linear_prepadded.1} parent=27 // pred_check
          %p193 = pneg %p90
        $region34: #{_linear_prepadded.1} parent=27 // pred_check_branch
          %195 = sbr.rel (%p193) target = $region36
        $region35: #{_linear_prepadded.1} parent=27 // pred_region
          %196 = dma.done %s189, 2048
        $region36: #{_linear_prepadded.1} parent=27 // pred_fallthru
          _
        %p197 = pneg %p62
        %p198 = pneg %p59
        %s199 = sand.u32 %s77, 1
        %s200 = scalar_lea.sflag [#allocation6], %s199
        %s201 = sand.u32 %s77, 1
        %s202 = smul.addr %s201, 128
        %s203 = scalar_lea.vmem [#allocation5], %s202
        %p204 = pneg %p90
        %p205 = pneg %p87
        %p206 = pneg %p118
        %p207 = pneg %p115
        %s208 = sand.u32 %s105, 1
        %s209 = scalar_lea.sflag [#allocation4], %s208
        %s210 = sand.u32 %s105, 1
        %s211 = smul.addr %s210, 16
        %s212 = scalar_lea.vmem [#allocation7], %s211
        %s213 = smul.u32 2, %s25
        %s214 = smul.u32 16, %s27
        %s215 = smul.u32 2, %s25
        %p216 = scmp.eq.s32.totalorder %s27, 0
        // Predicated region
        $region37: #{_linear_prepadded.1} parent=27 // pred_check
          %p217 = pneg %p216
        $region38: #{_linear_prepadded.1} parent=27 // pred_check_branch
          %219 = sbr.rel (%p217) target = $region40
        $region39: #{_linear_prepadded.1} parent=27 // pred_region
          %220 = vst [vmem:[%s212] sm:$0xff] 0.0
          %221 = vst [vmem:[%s212 + $0x8] sm:$0xff] 0.0
        $region40: #{_linear_prepadded.1} parent=27 // pred_fallthru
          _
        %v222 = vld [vmem:[%s212] sm:$0xff]
        %v223 = vld [vmem:[%s212 + $0x8] sm:$0xff]
        %v224 = vld [vmem:[#allocation2] sm:$0xff]
        %v225 = vld [vmem:[#allocation2 + $0x8] sm:$0xff]
        %v226 = vld [vmem:[%s192] sm:$0xff]
        %v227 = vld [vmem:[%s192 + $0x8] sm:$0xff]
        %v228 = vld [vmem:[%s192 + $0x10] sm:$0xff]
        %v229 = vld [vmem:[%s192 + $0x18] sm:$0xff]
        %v230 = vld [vmem:[%s192 + $0x20] sm:$0xff]
        %v231 = vld [vmem:[%s192 + $0x28] sm:$0xff]
        %v232 = vld [vmem:[%s192 + $0x30] sm:$0xff]
        %v233 = vld [vmem:[%s192 + $0x38] sm:$0xff]
        %v234 = vld [vmem:[%s192 + $0x40] sm:$0xff]
        %v235 = vld [vmem:[%s192 + $0x48] sm:$0xff]
        %v236 = vld [vmem:[%s192 + $0x50] sm:$0xff]
        %v237 = vld [vmem:[%s192 + $0x58] sm:$0xff]
        %v238 = vld [vmem:[%s192 + $0x60] sm:$0xff]
        %v239 = vld [vmem:[%s192 + $0x68] sm:$0xff]
        %v240 = vld [vmem:[%s192 + $0x70] sm:$0xff]
        %v241 = vld [vmem:[%s192 + $0x78] sm:$0xff]
        %242 = vmatprep.subr.mxu0 0.0
        %v243 = vand.u32 %v241, 4294901760
        %244 = vmatpush1.msra.mxu0 %v243
        %245 = vmatprep.subr.mxu0 0.0
        %v246 = vand.u32 %v240, 4294901760
        %247 = vmatpush1.msra.mxu0 %v246
        %248 = vmatprep.subr.mxu0 0.0
        %v249 = vand.u32 %v239, 4294901760
        %250 = vmatpush1.msra.mxu0 %v249
        %251 = vmatprep.subr.mxu0 0.0
        %v252 = vand.u32 %v238, 4294901760
        %253 = vmatpush1.msra.mxu0 %v252
        %254 = vmatprep.subr.mxu0 0.0
        %v255 = vand.u32 %v237, 4294901760
        %256 = vmatpush1.msra.mxu0 %v255
        %257 = vmatprep.subr.mxu0 0.0
        %v258 = vand.u32 %v236, 4294901760
        %259 = vmatpush1.msra.mxu0 %v258
        %260 = vmatprep.subr.mxu0 0.0
        %v261 = vand.u32 %v235, 4294901760
        %262 = vmatpush1.msra.mxu0 %v261
        %263 = vmatprep.subr.mxu0 0.0
        %v264 = vand.u32 %v234, 4294901760
        %265 = vmatpush1.msra.mxu0 %v264
        %266 = vmatprep.subr.mxu0 0.0
        %v267 = vand.u32 %v233, 4294901760
        %268 = vmatpush1.msra.mxu0 %v267
        %269 = vmatprep.subr.mxu0 0.0
        %v270 = vand.u32 %v232, 4294901760
        %271 = vmatpush1.msra.mxu0 %v270
        %272 = vmatprep.subr.mxu0 0.0
        %v273 = vand.u32 %v231, 4294901760
        %274 = vmatpush1.msra.mxu0 %v273
        %275 = vmatprep.subr.mxu0 0.0
        %v276 = vand.u32 %v230, 4294901760
        %277 = vmatpush1.msra.mxu0 %v276
        %278 = vmatprep.subr.mxu0 0.0
        %v279 = vand.u32 %v229, 4294901760
        %280 = vmatpush1.msra.mxu0 %v279
        %281 = vmatprep.subr.mxu0 0.0
        %v282 = vand.u32 %v228, 4294901760
        %283 = vmatpush1.msra.mxu0 %v282
        %284 = vmatprep.subr.mxu0 0.0
        %v285 = vand.u32 %v227, 4294901760
        %286 = vmatpush1.msra.mxu0 %v285
        %287 = vmatprep.subr.mxu0 0.0
        %v288 = vand.u32 %v226, 4294901760
        %289 = vmatpush1.msra.mxu0 %v288
        %290 = vmatprep.subr.mxu0 0.0
        %291 = vmatpush2.msra.mxu0 0.0
        %292 = vmatprep.subr.mxu0 0.0
        %293 = vmatpush2.msra.mxu0 0.0
        %294 = vmatprep.subr.mxu0 0.0
        %295 = vmatpush2.msra.mxu0 0.0
        %296 = vmatprep.subr.mxu0 0.0
        %297 = vmatpush2.msra.mxu0 0.0
        %298 = vmatprep.subr.mxu0 0.0
        %299 = vmatpush2.msra.mxu0 0.0
        %300 = vmatprep.subr.mxu0 0.0
        %301 = vmatpush2.msra.mxu0 0.0
        %302 = vmatprep.subr.mxu0 0.0
        %303 = vmatpush2.msra.mxu0 0.0
        %304 = vmatprep.subr.mxu0 0.0
        %305 = vmatpush2.msra.mxu0 0.0
        %306 = vmatprep.subr.mxu0 0.0
        %307 = vmatpush2.msra.mxu0 0.0
        %308 = vmatprep.subr.mxu0 0.0
        %309 = vmatpush2.msra.mxu0 0.0
        %310 = vmatprep.subr.mxu0 0.0
        %311 = vmatpush2.msra.mxu0 0.0
        %312 = vmatprep.subr.mxu0 0.0
        %313 = vmatpush2.msra.mxu0 0.0
        %314 = vmatprep.subr.mxu0 0.0
        %315 = vmatpush2.msra.mxu0 0.0
        %316 = vmatprep.subr.mxu0 0.0
        %317 = vmatpush2.msra.mxu0 0.0
        %318 = vmatprep.subr.mxu0 0.0
        %319 = vmatpush2.msra.mxu0 0.0
        %320 = vmatprep.subr.mxu0 0.0
        %321 = vmatpush2.msra.mxu0 0.0
        %322 = vmatprep.mubr.f32.mxu0 0.0
        %v323 = vand.u32 %v224, 4294901760
        %v324 = vsub.f32 %v224, %v323
        %v325 = vand.u32 %v324, 4294901760
        %v326 = vsub.f32 %v324, %v325
        %v327 = vand.u32 %v326, 4294901760
        %328 = vmatmul.mubr.f32.gmra.mxu0 %v327
        %v329 = vpop.f32.mrf.mxu0
        %v330 = vadd.f32 0.0, %v329
        %v331 = vpop.f32.mrf.mxu0
        %332 = vmatprep.mubr.f32.mxu0 0.0
        %v333 = vand.u32 %v225, 4294901760
        %v334 = vsub.f32 %v225, %v333
        %v335 = vand.u32 %v334, 4294901760
        %v336 = vsub.f32 %v334, %v335
        %v337 = vand.u32 %v336, 4294901760
        %338 = vmatmul.mubr.f32.gmra.mxu0 %v337
        %v339 = vpop.f32.mrf.mxu0
        %v340 = vadd.f32 0.0, %v339
        %v341 = vpop.f32.mrf.mxu0
        %342 = vdwg.mxu0
        %343 = vmatprep.subr.mxu0 0.0
        %v344 = vand.u32 %v241, 4294901760
        %v345 = vsub.f32 %v241, %v344
        %v346 = vand.u32 %v345, 4294901760
        %v347 = vsub.f32 %v345, %v346
        %v348 = vand.u32 %v347, 4294901760
        %349 = vmatpush1.msra.mxu0 %v348
        %350 = vmatprep.subr.mxu0 0.0
        %v351 = vand.u32 %v240, 4294901760
        %v352 = vsub.f32 %v240, %v351
        %v353 = vand.u32 %v352, 4294901760
        %v354 = vsub.f32 %v352, %v353
        %v355 = vand.u32 %v354, 4294901760
        %356 = vmatpush1.msra.mxu0 %v355
        %357 = vmatprep.subr.mxu0 0.0
        %v358 = vand.u32 %v239, 4294901760
        %v359 = vsub.f32 %v239, %v358
        %v360 = vand.u32 %v359, 4294901760
        %v361 = vsub.f32 %v359, %v360
        %v362 = vand.u32 %v361, 4294901760
        %363 = vmatpush1.msra.mxu0 %v362
        %364 = vmatprep.subr.mxu0 0.0
        %v365 = vand.u32 %v238, 4294901760
        %v366 = vsub.f32 %v238, %v365
        %v367 = vand.u32 %v366, 4294901760
        %v368 = vsub.f32 %v366, %v367
        %v369 = vand.u32 %v368, 4294901760
        %370 = vmatpush1.msra.mxu0 %v369
        %371 = vmatprep.subr.mxu0 0.0
        %v372 = vand.u32 %v237, 4294901760
        %v373 = vsub.f32 %v237, %v372
        %v374 = vand.u32 %v373, 4294901760
        %v375 = vsub.f32 %v373, %v374
        %v376 = vand.u32 %v375, 4294901760
        %377 = vmatpush1.msra.mxu0 %v376
        %378 = vmatprep.subr.mxu0 0.0
        %v379 = vand.u32 %v236, 4294901760
        %v380 = vsub.f32 %v236, %v379
        %v381 = vand.u32 %v380, 4294901760
        %v382 = vsub.f32 %v380, %v381
        %v383 = vand.u32 %v382, 4294901760
        %384 = vmatpush1.msra.mxu0 %v383
        %385 = vmatprep.subr.mxu0 0.0
        %v386 = vand.u32 %v235, 4294901760
        %v387 = vsub.f32 %v235, %v386
        %v388 = vand.u32 %v387, 4294901760
        %v389 = vsub.f32 %v387, %v388
        %v390 = vand.u32 %v389, 4294901760
        %391 = vmatpush1.msra.mxu0 %v390
        %392 = vmatprep.subr.mxu0 0.0
        %v393 = vand.u32 %v234, 4294901760
        %v394 = vsub.f32 %v234, %v393
        %v395 = vand.u32 %v394, 4294901760
        %v396 = vsub.f32 %v394, %v395
        %v397 = vand.u32 %v396, 4294901760
        %398 = vmatpush1.msra.mxu0 %v397
        %399 = vmatprep.subr.mxu0 0.0
        %v400 = vand.u32 %v233, 4294901760
        %v401 = vsub.f32 %v233, %v400
        %v402 = vand.u32 %v401, 4294901760
        %v403 = vsub.f32 %v401, %v402
        %v404 = vand.u32 %v403, 4294901760
        %405 = vmatpush1.msra.mxu0 %v404
        %406 = vmatprep.subr.mxu0 0.0
        %v407 = vand.u32 %v232, 4294901760
        %v408 = vsub.f32 %v232, %v407
        %v409 = vand.u32 %v408, 4294901760
        %v410 = vsub.f32 %v408, %v409
        %v411 = vand.u32 %v410, 4294901760
        %412 = vmatpush1.msra.mxu0 %v411
        %413 = vmatprep.subr.mxu0 0.0
        %v414 = vand.u32 %v231, 4294901760
        %v415 = vsub.f32 %v231, %v414
        %v416 = vand.u32 %v415, 4294901760
        %v417 = vsub.f32 %v415, %v416
        %v418 = vand.u32 %v417, 4294901760
        %419 = vmatpush1.msra.mxu0 %v418
        %420 = vmatprep.subr.mxu0 0.0
        %v421 = vand.u32 %v230, 4294901760
        %v422 = vsub.f32 %v230, %v421
        %v423 = vand.u32 %v422, 4294901760
        %v424 = vsub.f32 %v422, %v423
        %v425 = vand.u32 %v424, 4294901760
        %426 = vmatpush1.msra.mxu0 %v425
        %427 = vmatprep.subr.mxu0 0.0
        %v428 = vand.u32 %v229, 4294901760
        %v429 = vsub.f32 %v229, %v428
        %v430 = vand.u32 %v429, 4294901760
        %v431 = vsub.f32 %v429, %v430
        %v432 = vand.u32 %v431, 4294901760
        %433 = vmatpush1.msra.mxu0 %v432
        %434 = vmatprep.subr.mxu0 0.0
        %v435 = vand.u32 %v228, 4294901760
        %v436 = vsub.f32 %v228, %v435
        %v437 = vand.u32 %v436, 4294901760
        %v438 = vsub.f32 %v436, %v437
        %v439 = vand.u32 %v438, 4294901760
        %440 = vmatpush1.msra.mxu0 %v439
        %441 = vmatprep.subr.mxu0 0.0
        %v442 = vand.u32 %v227, 4294901760
        %v443 = vsub.f32 %v227, %v442
        %v444 = vand.u32 %v443, 4294901760
        %v445 = vsub.f32 %v443, %v444
        %v446 = vand.u32 %v445, 4294901760
        %447 = vmatpush1.msra.mxu0 %v446
        %448 = vmatprep.subr.mxu0 0.0
        %v449 = vand.u32 %v226, 4294901760
        %v450 = vsub.f32 %v226, %v449
        %v451 = vand.u32 %v450, 4294901760
        %v452 = vsub.f32 %v450, %v451
        %v453 = vand.u32 %v452, 4294901760
        %454 = vmatpush1.msra.mxu0 %v453
        %455 = vmatprep.subr.mxu0 0.0
        %456 = vmatpush2.msra.mxu0 0.0
        %457 = vmatprep.subr.mxu0 0.0
        %458 = vmatpush2.msra.mxu0 0.0
        %459 = vmatprep.subr.mxu0 0.0
        %460 = vmatpush2.msra.mxu0 0.0
        %461 = vmatprep.subr.mxu0 0.0
        %462 = vmatpush2.msra.mxu0 0.0
        %463 = vmatprep.subr.mxu0 0.0
        %464 = vmatpush2.msra.mxu0 0.0
        %465 = vmatprep.subr.mxu0 0.0
        %466 = vmatpush2.msra.mxu0 0.0
        %467 = vmatprep.subr.mxu0 0.0
        %468 = vmatpush2.msra.mxu0 0.0
        %469 = vmatprep.subr.mxu0 0.0
        %470 = vmatpush2.msra.mxu0 0.0
        %471 = vmatprep.subr.mxu0 0.0
        %472 = vmatpush2.msra.mxu0 0.0
        %473 = vmatprep.subr.mxu0 0.0
        %474 = vmatpush2.msra.mxu0 0.0
        %475 = vmatprep.subr.mxu0 0.0
        %476 = vmatpush2.msra.mxu0 0.0
        %477 = vmatprep.subr.mxu0 0.0
        %478 = vmatpush2.msra.mxu0 0.0
        %479 = vmatprep.subr.mxu0 0.0
        %480 = vmatpush2.msra.mxu0 0.0
        %481 = vmatprep.subr.mxu0 0.0
        %482 = vmatpush2.msra.mxu0 0.0
        %483 = vmatprep.subr.mxu0 0.0
        %484 = vmatpush2.msra.mxu0 0.0
        %485 = vmatprep.subr.mxu0 0.0
        %486 = vmatpush2.msra.mxu0 0.0
        %487 = vmatprep.mubr.f32.mxu0 0.0
        %v488 = vand.u32 %v224, 4294901760
        %489 = vmatmul.mubr.f32.gmra.mxu0 %v488
        %v490 = vpop.f32.mrf.mxu0
        %v491 = vadd.f32 %v330, %v490
        %v492 = vpop.f32.mrf.mxu0
        %493 = vmatprep.mubr.f32.mxu0 0.0
        %v494 = vand.u32 %v225, 4294901760
        %495 = vmatmul.mubr.f32.gmra.mxu0 %v494
        %v496 = vpop.f32.mrf.mxu0
        %v497 = vadd.f32 %v340, %v496
        %v498 = vpop.f32.mrf.mxu0
        %499 = vdwg.mxu0
        %500 = vmatprep.subr.mxu0 0.0
        %v501 = vand.u32 %v241, 4294901760
        %v502 = vsub.f32 %v241, %v501
        %503 = vmatpush1.msra.mxu0 %v502
        %504 = vmatprep.subr.mxu0 0.0
        %v505 = vand.u32 %v240, 4294901760
        %v506 = vsub.f32 %v240, %v505
        %507 = vmatpush1.msra.mxu0 %v506
        %508 = vmatprep.subr.mxu0 0.0
        %v509 = vand.u32 %v239, 4294901760
        %v510 = vsub.f32 %v239, %v509
        %511 = vmatpush1.msra.mxu0 %v510
        %512 = vmatprep.subr.mxu0 0.0
        %v513 = vand.u32 %v238, 4294901760
        %v514 = vsub.f32 %v238, %v513
        %515 = vmatpush1.msra.mxu0 %v514
        %516 = vmatprep.subr.mxu0 0.0
        %v517 = vand.u32 %v237, 4294901760
        %v518 = vsub.f32 %v237, %v517
        %519 = vmatpush1.msra.mxu0 %v518
        %520 = vmatprep.subr.mxu0 0.0
        %v521 = vand.u32 %v236, 4294901760
        %v522 = vsub.f32 %v236, %v521
        %523 = vmatpush1.msra.mxu0 %v522
        %524 = vmatprep.subr.mxu0 0.0
        %v525 = vand.u32 %v235, 4294901760
        %v526 = vsub.f32 %v235, %v525
        %527 = vmatpush1.msra.mxu0 %v526
        %528 = vmatprep.subr.mxu0 0.0
        %v529 = vand.u32 %v234, 4294901760
        %v530 = vsub.f32 %v234, %v529
        %531 = vmatpush1.msra.mxu0 %v530
        %532 = vmatprep.subr.mxu0 0.0
        %v533 = vand.u32 %v233, 4294901760
        %v534 = vsub.f32 %v233, %v533
        %535 = vmatpush1.msra.mxu0 %v534
        %536 = vmatprep.subr.mxu0 0.0
        %v537 = vand.u32 %v232, 4294901760
        %v538 = vsub.f32 %v232, %v537
        %539 = vmatpush1.msra.mxu0 %v538
        %540 = vmatprep.subr.mxu0 0.0
        %v541 = vand.u32 %v231, 4294901760
        %v542 = vsub.f32 %v231, %v541
        %543 = vmatpush1.msra.mxu0 %v542
        %544 = vmatprep.subr.mxu0 0.0
        %v545 = vand.u32 %v230, 4294901760
        %v546 = vsub.f32 %v230, %v545
        %547 = vmatpush1.msra.mxu0 %v546
        %548 = vmatprep.subr.mxu0 0.0
        %v549 = vand.u32 %v229, 4294901760
        %v550 = vsub.f32 %v229, %v549
        %551 = vmatpush1.msra.mxu0 %v550
        %552 = vmatprep.subr.mxu0 0.0
        %v553 = vand.u32 %v228, 4294901760
        %v554 = vsub.f32 %v228, %v553
        %555 = vmatpush1.msra.mxu0 %v554
        %556 = vmatprep.subr.mxu0 0.0
        %v557 = vand.u32 %v227, 4294901760
        %v558 = vsub.f32 %v227, %v557
        %559 = vmatpush1.msra.mxu0 %v558
        %560 = vmatprep.subr.mxu0 0.0
        %v561 = vand.u32 %v226, 4294901760
        %v562 = vsub.f32 %v226, %v561
        %563 = vmatpush1.msra.mxu0 %v562
        %564 = vmatprep.subr.mxu0 0.0
        %565 = vmatpush2.msra.mxu0 0.0
        %566 = vmatprep.subr.mxu0 0.0
        %567 = vmatpush2.msra.mxu0 0.0
        %568 = vmatprep.subr.mxu0 0.0
        %569 = vmatpush2.msra.mxu0 0.0
        %570 = vmatprep.subr.mxu0 0.0
        %571 = vmatpush2.msra.mxu0 0.0
        %572 = vmatprep.subr.mxu0 0.0
        %573 = vmatpush2.msra.mxu0 0.0
        %574 = vmatprep.subr.mxu0 0.0
        %575 = vmatpush2.msra.mxu0 0.0
        %576 = vmatprep.subr.mxu0 0.0
        %577 = vmatpush2.msra.mxu0 0.0
        %578 = vmatprep.subr.mxu0 0.0
        %579 = vmatpush2.msra.mxu0 0.0
        %580 = vmatprep.subr.mxu0 0.0
        %581 = vmatpush2.msra.mxu0 0.0
        %582 = vmatprep.subr.mxu0 0.0
        %583 = vmatpush2.msra.mxu0 0.0
        %584 = vmatprep.subr.mxu0 0.0
        %585 = vmatpush2.msra.mxu0 0.0
        %586 = vmatprep.subr.mxu0 0.0
        %587 = vmatpush2.msra.mxu0 0.0
        %588 = vmatprep.subr.mxu0 0.0
        %589 = vmatpush2.msra.mxu0 0.0
        %590 = vmatprep.subr.mxu0 0.0
        %591 = vmatpush2.msra.mxu0 0.0
        %592 = vmatprep.subr.mxu0 0.0
        %593 = vmatpush2.msra.mxu0 0.0
        %594 = vmatprep.subr.mxu0 0.0
        %595 = vmatpush2.msra.mxu0 0.0
        %596 = vmatprep.mubr.f32.mxu0 0.0
        %v597 = vand.u32 %v224, 4294901760
        %v598 = vsub.f32 %v224, %v597
        %599 = vmatmul.mubr.f32.gmra.mxu0 %v598
        %v600 = vpop.f32.mrf.mxu0
        %v601 = vadd.f32 %v491, %v600
        %v602 = vpop.f32.mrf.mxu0
        %603 = vmatprep.mubr.f32.mxu0 0.0
        %v604 = vand.u32 %v225, 4294901760
        %v605 = vsub.f32 %v225, %v604
        %606 = vmatmul.mubr.f32.gmra.mxu0 %v605
        %v607 = vpop.f32.mrf.mxu0
        %v608 = vadd.f32 %v497, %v607
        %v609 = vpop.f32.mrf.mxu0
        %610 = vdwg.mxu0
        %611 = vmatprep.subr.mxu0 0.0
        %v612 = vand.u32 %v241, 4294901760
        %613 = vmatpush1.msra.mxu0 %v612
        %614 = vmatprep.subr.mxu0 0.0
        %v615 = vand.u32 %v240, 4294901760
        %616 = vmatpush1.msra.mxu0 %v615
        %617 = vmatprep.subr.mxu0 0.0
        %v618 = vand.u32 %v239, 4294901760
        %619 = vmatpush1.msra.mxu0 %v618
        %620 = vmatprep.subr.mxu0 0.0
        %v621 = vand.u32 %v238, 4294901760
        %622 = vmatpush1.msra.mxu0 %v621
        %623 = vmatprep.subr.mxu0 0.0
        %v624 = vand.u32 %v237, 4294901760
        %625 = vmatpush1.msra.mxu0 %v624
        %626 = vmatprep.subr.mxu0 0.0
        %v627 = vand.u32 %v236, 4294901760
        %628 = vmatpush1.msra.mxu0 %v627
        %629 = vmatprep.subr.mxu0 0.0
        %v630 = vand.u32 %v235, 4294901760
        %631 = vmatpush1.msra.mxu0 %v630
        %632 = vmatprep.subr.mxu0 0.0
        %v633 = vand.u32 %v234, 4294901760
        %634 = vmatpush1.msra.mxu0 %v633
        %635 = vmatprep.subr.mxu0 0.0
        %v636 = vand.u32 %v233, 4294901760
        %637 = vmatpush1.msra.mxu0 %v636
        %638 = vmatprep.subr.mxu0 0.0
        %v639 = vand.u32 %v232, 4294901760
        %640 = vmatpush1.msra.mxu0 %v639
        %641 = vmatprep.subr.mxu0 0.0
        %v642 = vand.u32 %v231, 4294901760
        %643 = vmatpush1.msra.mxu0 %v642
        %644 = vmatprep.subr.mxu0 0.0
        %v645 = vand.u32 %v230, 4294901760
        %646 = vmatpush1.msra.mxu0 %v645
        %647 = vmatprep.subr.mxu0 0.0
        %v648 = vand.u32 %v229, 4294901760
        %649 = vmatpush1.msra.mxu0 %v648
        %650 = vmatprep.subr.mxu0 0.0
        %v651 = vand.u32 %v228, 4294901760
        %652 = vmatpush1.msra.mxu0 %v651
        %653 = vmatprep.subr.mxu0 0.0
        %v654 = vand.u32 %v227, 4294901760
        %655 = vmatpush1.msra.mxu0 %v654
        %656 = vmatprep.subr.mxu0 0.0
        %v657 = vand.u32 %v226, 4294901760
        %658 = vmatpush1.msra.mxu0 %v657
        %659 = vmatprep.subr.mxu0 0.0
        %660 = vmatpush2.msra.mxu0 0.0
        %661 = vmatprep.subr.mxu0 0.0
        %662 = vmatpush2.msra.mxu0 0.0
        %663 = vmatprep.subr.mxu0 0.0
        %664 = vmatpush2.msra.mxu0 0.0
        %665 = vmatprep.subr.mxu0 0.0
        %666 = vmatpush2.msra.mxu0 0.0
        %667 = vmatprep.subr.mxu0 0.0
        %668 = vmatpush2.msra.mxu0 0.0
        %669 = vmatprep.subr.mxu0 0.0
        %670 = vmatpush2.msra.mxu0 0.0
        %671 = vmatprep.subr.mxu0 0.0
        %672 = vmatpush2.msra.mxu0 0.0
        %673 = vmatprep.subr.mxu0 0.0
        %674 = vmatpush2.msra.mxu0 0.0
        %675 = vmatprep.subr.mxu0 0.0
        %676 = vmatpush2.msra.mxu0 0.0
        %677 = vmatprep.subr.mxu0 0.0
        %678 = vmatpush2.msra.mxu0 0.0
        %679 = vmatprep.subr.mxu0 0.0
        %680 = vmatpush2.msra.mxu0 0.0
        %681 = vmatprep.subr.mxu0 0.0
        %682 = vmatpush2.msra.mxu0 0.0
        %683 = vmatprep.subr.mxu0 0.0
        %684 = vmatpush2.msra.mxu0 0.0
        %685 = vmatprep.subr.mxu0 0.0
        %686 = vmatpush2.msra.mxu0 0.0
        %687 = vmatprep.subr.mxu0 0.0
        %688 = vmatpush2.msra.mxu0 0.0
        %689 = vmatprep.subr.mxu0 0.0
        %690 = vmatpush2.msra.mxu0 0.0
        %691 = vmatprep.mubr.f32.mxu0 0.0
        %v692 = vand.u32 %v224, 4294901760
        %v693 = vsub.f32 %v224, %v692
        %v694 = vand.u32 %v693, 4294901760
        %695 = vmatmul.mubr.f32.gmra.mxu0 %v694
        %v696 = vpop.f32.mrf.mxu0
        %v697 = vadd.f32 %v601, %v696
        %v698 = vpop.f32.mrf.mxu0
        %699 = vmatprep.mubr.f32.mxu0 0.0
        %v700 = vand.u32 %v225, 4294901760
        %v701 = vsub.f32 %v225, %v700
        %v702 = vand.u32 %v701, 4294901760
        %703 = vmatmul.mubr.f32.gmra.mxu0 %v702
        %v704 = vpop.f32.mrf.mxu0
        %v705 = vadd.f32 %v608, %v704
        %v706 = vpop.f32.mrf.mxu0
        %707 = vdwg.mxu0
        %708 = vmatprep.subr.mxu0 0.0
        %v709 = vand.u32 %v241, 4294901760
        %v710 = vsub.f32 %v241, %v709
        %v711 = vand.u32 %v710, 4294901760
        %712 = vmatpush1.msra.mxu0 %v711
        %713 = vmatprep.subr.mxu0 0.0
        %v714 = vand.u32 %v240, 4294901760
        %v715 = vsub.f32 %v240, %v714
        %v716 = vand.u32 %v715, 4294901760
        %717 = vmatpush1.msra.mxu0 %v716
        %718 = vmatprep.subr.mxu0 0.0
        %v719 = vand.u32 %v239, 4294901760
        %v720 = vsub.f32 %v239, %v719
        %v721 = vand.u32 %v720, 4294901760
        %722 = vmatpush1.msra.mxu0 %v721
        %723 = vmatprep.subr.mxu0 0.0
        %v724 = vand.u32 %v238, 4294901760
        %v725 = vsub.f32 %v238, %v724
        %v726 = vand.u32 %v725, 4294901760
        %727 = vmatpush1.msra.mxu0 %v726
        %728 = vmatprep.subr.mxu0 0.0
        %v729 = vand.u32 %v237, 4294901760
        %v730 = vsub.f32 %v237, %v729
        %v731 = vand.u32 %v730, 4294901760
        %732 = vmatpush1.msra.mxu0 %v731
        %733 = vmatprep.subr.mxu0 0.0
        %v734 = vand.u32 %v236, 4294901760
        %v735 = vsub.f32 %v236, %v734
        %v736 = vand.u32 %v735, 4294901760
        %737 = vmatpush1.msra.mxu0 %v736
        %738 = vmatprep.subr.mxu0 0.0
        %v739 = vand.u32 %v235, 4294901760
        %v740 = vsub.f32 %v235, %v739
        %v741 = vand.u32 %v740, 4294901760
        %742 = vmatpush1.msra.mxu0 %v741
        %743 = vmatprep.subr.mxu0 0.0
        %v744 = vand.u32 %v234, 4294901760
        %v745 = vsub.f32 %v234, %v744
        %v746 = vand.u32 %v745, 4294901760
        %747 = vmatpush1.msra.mxu0 %v746
        %748 = vmatprep.subr.mxu0 0.0
        %v749 = vand.u32 %v233, 4294901760
        %v750 = vsub.f32 %v233, %v749
        %v751 = vand.u32 %v750, 4294901760
        %752 = vmatpush1.msra.mxu0 %v751
        %753 = vmatprep.subr.mxu0 0.0
        %v754 = vand.u32 %v232, 4294901760
        %v755 = vsub.f32 %v232, %v754
        %v756 = vand.u32 %v755, 4294901760
        %757 = vmatpush1.msra.mxu0 %v756
        %758 = vmatprep.subr.mxu0 0.0
        %v759 = vand.u32 %v231, 4294901760
        %v760 = vsub.f32 %v231, %v759
        %v761 = vand.u32 %v760, 4294901760
        %762 = vmatpush1.msra.mxu0 %v761
        %763 = vmatprep.subr.mxu0 0.0
        %v764 = vand.u32 %v230, 4294901760
        %v765 = vsub.f32 %v230, %v764
        %v766 = vand.u32 %v765, 4294901760
        %767 = vmatpush1.msra.mxu0 %v766
        %768 = vmatprep.subr.mxu0 0.0
        %v769 = vand.u32 %v229, 4294901760
        %v770 = vsub.f32 %v229, %v769
        %v771 = vand.u32 %v770, 4294901760
        %772 = vmatpush1.msra.mxu0 %v771
        %773 = vmatprep.subr.mxu0 0.0
        %v774 = vand.u32 %v228, 4294901760
        %v775 = vsub.f32 %v228, %v774
        %v776 = vand.u32 %v775, 4294901760
        %777 = vmatpush1.msra.mxu0 %v776
        %778 = vmatprep.subr.mxu0 0.0
        %v779 = vand.u32 %v227, 4294901760
        %v780 = vsub.f32 %v227, %v779
        %v781 = vand.u32 %v780, 4294901760
        %782 = vmatpush1.msra.mxu0 %v781
        %783 = vmatprep.subr.mxu0 0.0
        %v784 = vand.u32 %v226, 4294901760
        %v785 = vsub.f32 %v226, %v784
        %v786 = vand.u32 %v785, 4294901760
        %787 = vmatpush1.msra.mxu0 %v786
        %788 = vmatprep.subr.mxu0 0.0
        %789 = vmatpush2.msra.mxu0 0.0
        %790 = vmatprep.subr.mxu0 0.0
        %791 = vmatpush2.msra.mxu0 0.0
        %792 = vmatprep.subr.mxu0 0.0
        %793 = vmatpush2.msra.mxu0 0.0
        %794 = vmatprep.subr.mxu0 0.0
        %795 = vmatpush2.msra.mxu0 0.0
        %796 = vmatprep.subr.mxu0 0.0
        %797 = vmatpush2.msra.mxu0 0.0
        %798 = vmatprep.subr.mxu0 0.0
        %799 = vmatpush2.msra.mxu0 0.0
        %800 = vmatprep.subr.mxu0 0.0
        %801 = vmatpush2.msra.mxu0 0.0
        %802 = vmatprep.subr.mxu0 0.0
        %803 = vmatpush2.msra.mxu0 0.0
        %804 = vmatprep.subr.mxu0 0.0
        %805 = vmatpush2.msra.mxu0 0.0
        %806 = vmatprep.subr.mxu0 0.0
        %807 = vmatpush2.msra.mxu0 0.0
        %808 = vmatprep.subr.mxu0 0.0
        %809 = vmatpush2.msra.mxu0 0.0
        %810 = vmatprep.subr.mxu0 0.0
        %811 = vmatpush2.msra.mxu0 0.0
        %812 = vmatprep.subr.mxu0 0.0
        %813 = vmatpush2.msra.mxu0 0.0
        %814 = vmatprep.subr.mxu0 0.0
        %815 = vmatpush2.msra.mxu0 0.0
        %816 = vmatprep.subr.mxu0 0.0
        %817 = vmatpush2.msra.mxu0 0.0
        %818 = vmatprep.subr.mxu0 0.0
        %819 = vmatpush2.msra.mxu0 0.0
        %820 = vmatprep.mubr.f32.mxu0 0.0
        %v821 = vand.u32 %v224, 4294901760
        %822 = vmatmul.mubr.f32.gmra.mxu0 %v821
        %v823 = vpop.f32.mrf.mxu0
        %v824 = vadd.f32 %v697, %v823
        %v825 = vpop.f32.mrf.mxu0
        %826 = vmatprep.mubr.f32.mxu0 0.0
        %v827 = vand.u32 %v225, 4294901760
        %828 = vmatmul.mubr.f32.gmra.mxu0 %v827
        %v829 = vpop.f32.mrf.mxu0
        %v830 = vadd.f32 %v705, %v829
        %v831 = vpop.f32.mrf.mxu0
        %832 = vdwg.mxu0
        %833 = vmatprep.subr.mxu0 0.0
        %v834 = vand.u32 %v241, 4294901760
        %835 = vmatpush1.msra.mxu0 %v834
        %836 = vmatprep.subr.mxu0 0.0
        %v837 = vand.u32 %v240, 4294901760
        %838 = vmatpush1.msra.mxu0 %v837
        %839 = vmatprep.subr.mxu0 0.0
        %v840 = vand.u32 %v239, 4294901760
        %841 = vmatpush1.msra.mxu0 %v840
        %842 = vmatprep.subr.mxu0 0.0
        %v843 = vand.u32 %v238, 4294901760
        %844 = vmatpush1.msra.mxu0 %v843
        %845 = vmatprep.subr.mxu0 0.0
        %v846 = vand.u32 %v237, 4294901760
        %847 = vmatpush1.msra.mxu0 %v846
        %848 = vmatprep.subr.mxu0 0.0
        %v849 = vand.u32 %v236, 4294901760
        %850 = vmatpush1.msra.mxu0 %v849
        %851 = vmatprep.subr.mxu0 0.0
        %v852 = vand.u32 %v235, 4294901760
        %853 = vmatpush1.msra.mxu0 %v852
        %854 = vmatprep.subr.mxu0 0.0
        %v855 = vand.u32 %v234, 4294901760
        %856 = vmatpush1.msra.mxu0 %v855
        %857 = vmatprep.subr.mxu0 0.0
        %v858 = vand.u32 %v233, 4294901760
        %859 = vmatpush1.msra.mxu0 %v858
        %860 = vmatprep.subr.mxu0 0.0
        %v861 = vand.u32 %v232, 4294901760
        %862 = vmatpush1.msra.mxu0 %v861
        %863 = vmatprep.subr.mxu0 0.0
        %v864 = vand.u32 %v231, 4294901760
        %865 = vmatpush1.msra.mxu0 %v864
        %866 = vmatprep.subr.mxu0 0.0
        %v867 = vand.u32 %v230, 4294901760
        %868 = vmatpush1.msra.mxu0 %v867
        %869 = vmatprep.subr.mxu0 0.0
        %v870 = vand.u32 %v229, 4294901760
        %871 = vmatpush1.msra.mxu0 %v870
        %872 = vmatprep.subr.mxu0 0.0
        %v873 = vand.u32 %v228, 4294901760
        %874 = vmatpush1.msra.mxu0 %v873
        %875 = vmatprep.subr.mxu0 0.0
        %v876 = vand.u32 %v227, 4294901760
        %877 = vmatpush1.msra.mxu0 %v876
        %878 = vmatprep.subr.mxu0 0.0
        %v879 = vand.u32 %v226, 4294901760
        %880 = vmatpush1.msra.mxu0 %v879
        %881 = vmatprep.subr.mxu0 0.0
        %882 = vmatpush2.msra.mxu0 0.0
        %883 = vmatprep.subr.mxu0 0.0
        %884 = vmatpush2.msra.mxu0 0.0
        %885 = vmatprep.subr.mxu0 0.0
        %886 = vmatpush2.msra.mxu0 0.0
        %887 = vmatprep.subr.mxu0 0.0
        %888 = vmatpush2.msra.mxu0 0.0
        %889 = vmatprep.subr.mxu0 0.0
        %890 = vmatpush2.msra.mxu0 0.0
        %891 = vmatprep.subr.mxu0 0.0
        %892 = vmatpush2.msra.mxu0 0.0
        %893 = vmatprep.subr.mxu0 0.0
        %894 = vmatpush2.msra.mxu0 0.0
        %895 = vmatprep.subr.mxu0 0.0
        %896 = vmatpush2.msra.mxu0 0.0
        %897 = vmatprep.subr.mxu0 0.0
        %898 = vmatpush2.msra.mxu0 0.0
        %899 = vmatprep.subr.mxu0 0.0
        %900 = vmatpush2.msra.mxu0 0.0
        %901 = vmatprep.subr.mxu0 0.0
        %902 = vmatpush2.msra.mxu0 0.0
        %903 = vmatprep.subr.mxu0 0.0
        %904 = vmatpush2.msra.mxu0 0.0
        %905 = vmatprep.subr.mxu0 0.0
        %906 = vmatpush2.msra.mxu0 0.0
        %907 = vmatprep.subr.mxu0 0.0
        %908 = vmatpush2.msra.mxu0 0.0
        %909 = vmatprep.subr.mxu0 0.0
        %910 = vmatpush2.msra.mxu0 0.0
        %911 = vmatprep.subr.mxu0 0.0
        %912 = vmatpush2.msra.mxu0 0.0
        %913 = vmatprep.mubr.f32.mxu0 0.0
        %v914 = vand.u32 %v224, 4294901760
        %915 = vmatmul.mubr.f32.gmra.mxu0 %v914
        %v916 = vpop.f32.mrf.mxu0
        %v917 = vadd.f32 %v824, %v916
        %v918 = vpop.f32.mrf.mxu0
        %919 = vmatprep.mubr.f32.mxu0 0.0
        %v920 = vand.u32 %v225, 4294901760
        %921 = vmatmul.mubr.f32.gmra.mxu0 %v920
        %v922 = vpop.f32.mrf.mxu0
        %v923 = vadd.f32 %v830, %v922
        %v924 = vpop.f32.mrf.mxu0
        %925 = vdwg.mxu0
        %v926 = vadd.f32 %v222, %v917
        %v927 = vadd.f32 %v223, %v923
        %928 = vst [vmem:[%s212] sm:$0xff] %v926
        %929 = vst [vmem:[%s212 + $0x8] sm:$0xff] %v927
        %s930 = sand.u32 %s105, 1
        %s931 = scalar_lea.sflag [#allocation4], %s930
        %s932 = sand.u32 %s105, 1
        %s933 = smul.addr %s932, 16
        %s934 = scalar_lea.vmem [#allocation7], %s933
        // Predicated region
        $region41: #{_linear_prepadded.1} parent=27 // pred_check
          %p935 = pneg %p115
        $region42: #{_linear_prepadded.1} parent=27 // pred_check_branch
          %937 = sbr.rel (%p935) target = $region44
        $region43: #{_linear_prepadded.1} parent=27 // pred_region
          %s938 = smul.u32 2, %s25
          %s940 = ssub.s32 256, 256
          %941 = vsyncadd %s931, %s940
          %s942 = smul.addr %s938, 2
          %s943 = sadd.s32 %s26, %s942
          %s944 = smul.addr %s943, 128
          %s945 = scalar_lea.hbm %s2, %s944
          %s946 = sshll.u32 %s934, 4
          %s947 = int_to_ptr.vmem [resolvable:$true] %s946
          %952 = dma.vmem_to_hbm [thread:$0]  %s947, 256, %s945, %s931, 128, 256, 8
        $region44: #{_linear_prepadded.1} parent=27 // pred_fallthru
          _
      $region28: #{_linear_prepadded.1} parent=5 // pred_fallthru
        _
      %p953 = scmp.le.s32.totalorder 2, %s15
      // Predicated region
      $region45: #{_linear_prepadded.1} parent=5 // pred_check
        %p954 = pneg %p953
      $region46: #{_linear_prepadded.1} parent=5 // pred_check_branch
        %956 = sbr.rel (%p954) target = $region48
      $region47: #{_linear_prepadded.1} parent=5 // pred_region
        %s957 = ssub.s32 %s15, 2
        // Predicated region
        $region49: #{_linear_prepadded.1} parent=47 // pred_check
          %p958 = pneg %p121
        $region50: #{_linear_prepadded.1} parent=47 // pred_check_branch
          %960 = sbr.rel (%p958) target = $region52
        $region51: #{_linear_prepadded.1} parent=47 // pred_region
          %s961 = sand.u32 %s106, 1
          %s962 = scalar_lea.sflag [#allocation4], %s961
          %s963 = sand.u32 %s106, 1
          %s964 = smul.addr %s963, 16
          %s965 = scalar_lea.vmem [#allocation7], %s964
          %966 = dma.done %s962, 256
        $region52: #{_linear_prepadded.1} parent=47 // pred_fallthru
          _
      $region48: #{_linear_prepadded.1} parent=5 // pred_fallthru
        _
    $region6: #{_linear_prepadded.1} parent=1 // loop_footer
      %s19 = sadd.s32 1, %s15
    $region7: #{_linear_prepadded.1} parent=1 // loop_footer_branch
      %14 = sbr.rel target = $region3
    $region8: #{_linear_prepadded.1} parent=1 // loop_exit
      _
    %967 = vsyncpa [#allocation3], 1
    %s968 = scalar_lea.sflag [#allocation3], 1
    %969 = vsyncpa %s968, 1
    %970 = vsyncpa [#allocation6], 1
    %s971 = scalar_lea.sflag [#allocation6], 1
    %972 = vsyncpa %s971, 1
    %973 = vsyncpa [#allocation4], 1
    %s974 = scalar_lea.sflag [#allocation4], 1
    %975 = vsyncpa %s974, 1

</llo_original>
